<compile_context>
chip_gen: v7x
topology: tpu7x:2x2x1
jax: 0.10.0
libtpu: 0.0.40
codegen_flags: <defaults>
</compile_context>

<pallas_src>
import functools

import jax
import jax.numpy as jnp
from jax.experimental import pallas as pl
from jax.experimental.pallas import tpu as pltpu

LANE = 128                 # boxes per row of the (m, 512) view
ROW_LANES = 4 * LANE       # 512 lanes/row: 128 boxes x 4 interleaved coords
MAX_BLOCK_ROWS = 1024      # 1024 x 512 x 4 B = 2 MiB per input block
TARGET_GRID = 4            # aim for >= 4 grid steps (v7x megacore + pipelining)


def _block_rows(m):
    """Pick the block row count (multiple of 8, or the full dim when tiny)."""
    if m <= 8:
        return m                      # full-dim block (legal when == array dim)
    tm = -(-m // TARGET_GRID)         # aim for >= TARGET_GRID blocks
    tm = ((tm + 7) // 8) * 8          # sublane multiple of 8
    return max(8, min(MAX_BLOCK_ROWS, tm))


def _giou_kernel(pred_ref, tgt_ref, out_ref, *, eps, n, tm, reduce_out):
    i = pl.program_id(0)
    p = pred_ref[...]   # (tm, 512): lanes 4j..4j+3 = x1,y1,x2,y2 of box j
    t = tgt_ref[...]

    # Static lane rotations (XLU slot): r2 aligns x2/y2 onto the x1/y1 lanes,
    # r1 aligns the y lane onto the x lane for the w*h products.
    r2 = lambda x: pltpu.roll(x, shift=ROW_LANES - 2, axis=1)
    r1 = lambda x: pltpu.roll(x, shift=ROW_LANES - 1, axis=1)

    mn = jnp.minimum(p, t)
    mx = jnp.maximum(p, t)

    wh_i = jnp.maximum(r2(mn) - mx, 0.0)   # intersection w @ 4j, h @ 4j+1
    wh_e = jnp.maximum(r2(mx) - mn, 0.0)   # enclosing box w @ 4j, h @ 4j+1
    wh_p = r2(p) - p                        # pred  w @ 4j, h @ 4j+1
    wh_t = r2(t) - t                        # target w @ 4j, h @ 4j+1

    overlap = wh_i * r1(wh_i)               # valid at lanes 4j
    ap = wh_p * r1(wh_p)
    ag = wh_t * r1(wh_t)
    enclose = wh_e * r1(wh_e) + eps
    union = ap + ag - overlap + eps

    # loss = 1 - giou = 2 - overlap/union - union/enclose
    loss = (2.0
            - overlap * pl.reciprocal(union, approx=False)
            - union * pl.reciprocal(enclose, approx=False))

    # Only lanes 4j carry a real box; zero the rest so partial sums are exact.
    lane = jax.lax.broadcasted_iota(jnp.int32, loss.shape, 1)
    loss = jnp.where((lane & 3) == 0, loss, 0.0)

    last = pl.num_programs(0) - 1

    def _tail_masked():
        # Mask boxes >= n (wrapper zero-padding + Pallas' partial last block);
        # padding only ever lands in the last grid block.
        row = jax.lax.broadcasted_iota(jnp.int32, loss.shape, 0)
        box = (i * tm + row) * LANE + (lane >> 2)
        return jnp.where(box < n, loss, 0.0)

    if reduce_out:
        @pl.when(i != last)
        def _():
            out_ref[...] = jnp.sum(loss, axis=0, keepdims=True)[None]

        @pl.when(i == last)
        def _():
            out_ref[...] = jnp.sum(_tail_masked(), axis=0, keepdims=True)[None]
    else:
        @pl.when(i != last)
        def _():
            out_ref[...] = loss

        @pl.when(i == last)
        def _():
            out_ref[...] = _tail_masked()


def giou_loss_pallas(pred, target, *, eps=1e-6, reduction="mean",
                     loss_weight=1.0, avg_factor=None):
    """pred, target: (n, 4) float boxes (x1, y1, x2, y2).  mmdet GIoULoss fwd."""
    assert pred.shape == target.shape and pred.shape[-1] == 4
    assert reduction in ("none", "mean", "sum")
    n = pred.shape[0]
    if n == 0:
        if reduction == "none":
            return jnp.zeros((0,), jnp.float32)
        return jnp.zeros((), jnp.float32)

    m = -(-n // LANE)          # rows of 128 boxes
    n_pad = m * LANE
    tm = _block_rows(m)
    grid_n = -(-m // tm)

    def _prep(x):
        x = x.astype(jnp.float32)
        if n_pad != n:
            x = jnp.pad(x, ((0, n_pad - n), (0, 0)))
        return x.reshape(m, ROW_LANES)   # contiguous reshape, no relayout pass

    pred_r = _prep(pred)
    tgt_r = _prep(target)

    reduce_out = reduction != "none"
    if reduce_out:
        out_shape = jax.ShapeDtypeStruct((grid_n, 1, ROW_LANES), jnp.float32)
        out_spec = pl.BlockSpec((1, 1, ROW_LANES), lambda i: (i, 0, 0))
    else:
        out_shape = jax.ShapeDtypeStruct((m, ROW_LANES), jnp.float32)
        out_spec = pl.BlockSpec((tm, ROW_LANES), lambda i: (i, 0))

    out = pl.pallas_call(
        functools.partial(_giou_kernel, eps=eps, n=n, tm=tm,
                          reduce_out=reduce_out),
        out_shape=out_shape,
        grid=(grid_n,),
        in_specs=[pl.BlockSpec((tm, ROW_LANES), lambda i: (i, 0)),
                  pl.BlockSpec((tm, ROW_LANES), lambda i: (i, 0))],
        out_specs=out_spec,
        compiler_params=pltpu.CompilerParams(
            dimension_semantics=("parallel",)),
    )(pred_r, tgt_r)

    # TODO(synk): per-element `weight` argument of mmdet weighted_loss not
    # plumbed through; only the weight=None path is implemented.
    if reduction == "none":
        return loss_weight * out.reshape(n_pad, 4)[:n, 0]
    total = jnp.sum(out)   # tiny (grid, 1, 512) per-block partials
    if reduction == "sum":
        return loss_weight * total
    denom = jnp.float32(avg_factor) if avg_factor is not None else jnp.float32(n)
    return loss_weight * total / denom


def _giou_loss_ref(pred, target, eps=1e-6):
    lt = jnp.maximum(pred[:, :2], target[:, :2])
    rb = jnp.minimum(pred[:, 2:], target[:, 2:])
    wh = jnp.maximum(rb - lt, 0.0)
    overlap = wh[:, 0] * wh[:, 1]
    ap = (pred[:, 2] - pred[:, 0]) * (pred[:, 3] - pred[:, 1])
    ag = (target[:, 2] - target[:, 0]) * (target[:, 3] - target[:, 1])
    union = ap + ag - overlap + eps
    ious = overlap / union
    ex1y1 = jnp.minimum(pred[:, :2], target[:, :2])
    ex2y2 = jnp.maximum(pred[:, 2:], target[:, 2:])
    ewh = jnp.maximum(ex2y2 - ex1y1, 0.0)
    earea = ewh[:, 0] * ewh[:, 1] + eps
    gious = ious - (earea - union) / earea
    return 1.0 - gious


def _make_boxes(key, n):
    k1, k2, k3, k4 = jax.random.split(key, 4)
    p_xy = jax.random.uniform(k1, (n, 2), jnp.float32, 0.0, 10.0)
    p_wh = jax.random.uniform(k2, (n, 2), jnp.float32, 1.0, 5.0)
    pred = jnp.concatenate([p_xy, p_xy + p_wh], axis=-1)
    t_xy = jax.random.uniform(k3, (n, 2), jnp.float32, 0.0, 10.0)
    t_wh = jax.random.uniform(k4, (n, 2), jnp.float32, 1.0, 5.0)
    target = jnp.concatenate([t_xy, t_xy + t_wh], axis=-1)
    return pred, target


if __name__ == "__main__":
    key = jax.random.PRNGKey(0)

    # --- small case (single block, heavy padding): default GIoULoss() config ---
    n = 10
    pred, target = _make_boxes(key, n)
    ref_elem = _giou_loss_ref(pred, target, eps=1e-6)

    out_mean = jax.block_until_ready(
        giou_loss_pallas(pred, target, eps=1e-6, reduction="mean",
                         loss_weight=1.0))
    assert jnp.allclose(out_mean, jnp.mean(ref_elem), rtol=1e-5, atol=1e-5), (
        out_mean, jnp.mean(ref_elem))

    out_none = jax.block_until_ready(
        giou_loss_pallas(pred, target, eps=1e-6, reduction="none"))
    assert jnp.allclose(out_none, ref_elem, rtol=1e-5, atol=1e-5)

    out_sum = jax.block_until_ready(
        giou_loss_pallas(pred, target, eps=1e-6, reduction="sum"))
    assert jnp.allclose(out_sum, jnp.sum(ref_elem), rtol=1e-5, atol=1e-5)

    # --- multi-block case with tail padding (m=16, tm=8, grid=2) ---
    n2 = 2000
    pred2, target2 = _make_boxes(jax.random.PRNGKey(1), n2)
    ref2 = _giou_loss_ref(pred2, target2, eps=1e-6)
    out2_mean = jax.block_until_ready(
        giou_loss_pallas(pred2, target2, eps=1e-6, reduction="mean"))
    assert jnp.allclose(out2_mean, jnp.mean(ref2), rtol=1e-4, atol=1e-4)
    out2_none = jax.block_until_ready(
        giou_loss_pallas(pred2, target2, eps=1e-6, reduction="none"))
    assert jnp.allclose(out2_none, ref2, rtol=1e-4, atol=1e-4)

    # --- non-divisible grid (m=11, tm=8 -> partial last block) ---
    n3 = 1300
    pred3, target3 = _make_boxes(jax.random.PRNGKey(2), n3)
    ref3 = _giou_loss_ref(pred3, target3, eps=1e-6)
    out3_mean = jax.block_until_ready(
        giou_loss_pallas(pred3, target3, eps=1e-6, reduction="mean"))
    assert jnp.allclose(out3_mean, jnp.mean(ref3), rtol=1e-4, atol=1e-4)

    print("KERNEL_OK")
</pallas_src>

<mosaic_0001>
module attributes {stable_mosaic.version = 11 : i64} {
  func.func @_giou_kernel(%arg0: i32, %arg1: memref<1x512xf32, #tpu.memory_space<vmem>>, %arg2: memref<1x512xf32, #tpu.memory_space<vmem>>, %arg3: memref<1x1x512xf32, #tpu.memory_space<vmem>>) attributes {dimension_semantics = [#tpu.dimension_semantics<parallel>], iteration_bounds = array<i64: 1>, scalar_prefetch = 0 : i64, scratch_operands = 0 : i64, tpu.core_type = #tpu.core_type<tc>, window_params = [{transform_indices = @transform_0, window_bounds = array<i64: 1, 512>}, {transform_indices = @transform_1, window_bounds = array<i64: 1, 512>}, {transform_indices = @transform_2, window_bounds = array<i64: 1, 1, 512>}]} {
    %c0 = arith.constant 0 : index
    %c0_0 = arith.constant 0 : index
    %0 = vector.load %arg1[%c0, %c0_0] : memref<1x512xf32, #tpu.memory_space<vmem>>, vector<1x512xf32>
    %c0_1 = arith.constant 0 : index
    %c0_2 = arith.constant 0 : index
    %1 = vector.load %arg2[%c0_1, %c0_2] : memref<1x512xf32, #tpu.memory_space<vmem>>, vector<1x512xf32>
    %2 = arith.minimumf %0, %1 : vector<1x512xf32>
    %3 = arith.maximumf %0, %1 : vector<1x512xf32>
    %c510_i32 = arith.constant 510 : i32
    %4 = tpu.dynamic_rotate %2 by %c510_i32 dim 1 : vector<1x512xf32>, i32 -> vector<1x512xf32>
    %5 = arith.subf %4, %3 : vector<1x512xf32>
    %cst = arith.constant 0.000000e+00 : f32
    %6 = vector.broadcast %cst : f32 to vector<1x512xf32>
    %7 = arith.maximumf %5, %6 : vector<1x512xf32>
    %c510_i32_3 = arith.constant 510 : i32
    %8 = tpu.dynamic_rotate %3 by %c510_i32_3 dim 1 : vector<1x512xf32>, i32 -> vector<1x512xf32>
    %9 = arith.subf %8, %2 : vector<1x512xf32>
    %cst_4 = arith.constant 0.000000e+00 : f32
    %10 = vector.broadcast %cst_4 : f32 to vector<1x512xf32>
    %11 = arith.maximumf %9, %10 : vector<1x512xf32>
    %c510_i32_5 = arith.constant 510 : i32
    %12 = tpu.dynamic_rotate %0 by %c510_i32_5 dim 1 : vector<1x512xf32>, i32 -> vector<1x512xf32>
    %13 = arith.subf %12, %0 : vector<1x512xf32>
    %c510_i32_6 = arith.constant 510 : i32
    %14 = tpu.dynamic_rotate %1 by %c510_i32_6 dim 1 : vector<1x512xf32>, i32 -> vector<1x512xf32>
    %15 = arith.subf %14, %1 : vector<1x512xf32>
    %c511_i32 = arith.constant 511 : i32
    %16 = tpu.dynamic_rotate %7 by %c511_i32 dim 1 : vector<1x512xf32>, i32 -> vector<1x512xf32>
    %17 = arith.mulf %7, %16 : vector<1x512xf32>
    %c511_i32_7 = arith.constant 511 : i32
    %18 = tpu.dynamic_rotate %13 by %c511_i32_7 dim 1 : vector<1x512xf32>, i32 -> vector<1x512xf32>
    %19 = arith.mulf %13, %18 : vector<1x512xf32>
    %c511_i32_8 = arith.constant 511 : i32
    %20 = tpu.dynamic_rotate %15 by %c511_i32_8 dim 1 : vector<1x512xf32>, i32 -> vector<1x512xf32>
    %21 = arith.mulf %15, %20 : vector<1x512xf32>
    %c511_i32_9 = arith.constant 511 : i32
    %22 = tpu.dynamic_rotate %11 by %c511_i32_9 dim 1 : vector<1x512xf32>, i32 -> vector<1x512xf32>
    %23 = arith.mulf %11, %22 : vector<1x512xf32>
    %cst_10 = arith.constant 9.99999997E-7 : f32
    %24 = vector.broadcast %cst_10 : f32 to vector<1x512xf32>
    %25 = arith.addf %23, %24 : vector<1x512xf32>
    %26 = arith.addf %19, %21 : vector<1x512xf32>
    %27 = arith.subf %26, %17 : vector<1x512xf32>
    %cst_11 = arith.constant 9.99999997E-7 : f32
    %28 = vector.broadcast %cst_11 : f32 to vector<1x512xf32>
    %29 = arith.addf %27, %28 : vector<1x512xf32>
    %30 = tpu.reciprocal %29 : vector<1x512xf32> -> vector<1x512xf32>
    %31 = arith.mulf %17, %30 : vector<1x512xf32>
    %cst_12 = arith.constant 2.000000e+00 : f32
    %32 = vector.broadcast %cst_12 : f32 to vector<1x512xf32>
    %33 = arith.subf %32, %31 : vector<1x512xf32>
    %34 = tpu.reciprocal %25 : vector<1x512xf32> -> vector<1x512xf32>
    %35 = arith.mulf %29, %34 : vector<1x512xf32>
    %36 = arith.subf %33, %35 : vector<1x512xf32>
    %37 = tpu.iota {dimensions = array<i32: 1>} : vector<1x512xi32>
    %c3_i32 = arith.constant 3 : i32
    %38 = vector.broadcast %c3_i32 : i32 to vector<1x512xi32>
    %39 = arith.andi %37, %38 : vector<1x512xi32>
    %c0_i32 = arith.constant 0 : i32
    %40 = vector.broadcast %c0_i32 : i32 to vector<1x512xi32>
    %41 = arith.cmpi eq, %39, %40 : vector<1x512xi32>
    %cst_13 = arith.constant 0.000000e+00 : f32
    %42 = vector.broadcast %cst_13 : f32 to vector<1x512xf32>
    %43 = arith.select %41, %36, %42 : vector<1x512xi1>, vector<1x512xf32>
    %c0_i32_14 = arith.constant 0 : i32
    %44 = arith.cmpi ne, %arg0, %c0_i32_14 : i32
    %45 = arith.extui %44 : i1 to i32
    %c0_i32_15 = arith.constant 0 : i32
    %46 = arith.cmpi ne, %45, %c0_i32_15 : i32
    scf.if %46 {
      %cst_18 = arith.constant dense<0.000000e+00> : vector<512xf32>
      %50 = vector.multi_reduction <add>, %43, %cst_18 [0] : vector<1x512xf32> to vector<512xf32>
      %51 = vector.shape_cast %50 : vector<512xf32> to vector<1x512xf32>
      %52 = vector.shape_cast %51 : vector<1x512xf32> to vector<1x1x512xf32>
      %c0_19 = arith.constant 0 : index
      %c0_20 = arith.constant 0 : index
      %c0_21 = arith.constant 0 : index
      %53 = vector.load %arg3[%c0_19, %c0_20, %c0_21] : memref<1x1x512xf32, #tpu.memory_space<vmem>>, vector<1x1x512xf32>
      tpu.vector_store %arg3[%c0_19, %c0_20, %c0_21], %52 {strides = array<i32>} : memref<1x1x512xf32, #tpu.memory_space<vmem>>, vector<1x1x512xf32>,
    } else {
    }
    %c0_i32_16 = arith.constant 0 : i32
    %47 = arith.cmpi eq, %arg0, %c0_i32_16 : i32
    %48 = arith.extui %47 : i1 to i32
    %c0_i32_17 = arith.constant 0 : i32
    %49 = arith.cmpi ne, %48, %c0_i32_17 : i32
    scf.if %49 {
      %50 = tpu.iota {dimensions = array<i32: 0>} : vector<1x512xi32>
      %c1_i32 = arith.constant 1 : i32
      %51 = arith.muli %arg0, %c1_i32 : i32
      %52 = vector.broadcast %51 : i32 to vector<1x512xi32>
      %53 = arith.addi %52, %50 : vector<1x512xi32>
      %c128_i32 = arith.constant 128 : i32
      %54 = vector.broadcast %c128_i32 : i32 to vector<1x512xi32>
      %55 = arith.muli %53, %54 : vector<1x512xi32>
      %c2_i32 = arith.constant 2 : i32
      %56 = vector.broadcast %c2_i32 : i32 to vector<1x512xi32>
      %57 = arith.shrsi %37, %56 : vector<1x512xi32>
      %58 = arith.addi %55, %57 : vector<1x512xi32>
      %c10_i32 = arith.constant 10 : i32
      %59 = vector.broadcast %c10_i32 : i32 to vector<1x512xi32>
      %60 = arith.cmpi slt, %58, %59 : vector<1x512xi32>
      %cst_18 = arith.constant 0.000000e+00 : f32
      %61 = vector.broadcast %cst_18 : f32 to vector<1x512xf32>
      %62 = arith.select %60, %43, %61 : vector<1x512xi1>, vector<1x512xf32>
      %cst_19 = arith.constant dense<0.000000e+00> : vector<512xf32>
      %63 = vector.multi_reduction <add>, %62, %cst_19 [0] : vector<1x512xf32> to vector<512xf32>
      %64 = vector.shape_cast %63 : vector<512xf32> to vector<1x512xf32>
      %65 = vector.shape_cast %64 : vector<1x512xf32> to vector<1x1x512xf32>
      %c0_20 = arith.constant 0 : index
      %c0_21 = arith.constant 0 : index
      %c0_22 = arith.constant 0 : index
      %66 = vector.load %arg3[%c0_20, %c0_21, %c0_22] : memref<1x1x512xf32, #tpu.memory_space<vmem>>, vector<1x1x512xf32>
      tpu.vector_store %arg3[%c0_20, %c0_21, %c0_22], %65 {strides = array<i32>} : memref<1x1x512xf32, #tpu.memory_space<vmem>>, vector<1x1x512xf32>,
    } else {
    }
    return
  }
  func.func @transform_0(%arg0: i32) -> (i32, i32) {
    %c0_i32 = arith.constant 0 : i32
    %c0_i32_0 = arith.constant 0 : i32
    return %arg0, %c0_i32 : i32, i32
  }
  func.func @transform_1(%arg0: i32) -> (i32, i32) {
    %c0_i32 = arith.constant 0 : i32
    %c0_i32_0 = arith.constant 0 : i32
    return %arg0, %c0_i32 : i32, i32
  }
  func.func @transform_2(%arg0: i32) -> (i32, i32, i32) {
    %c0_i32 = arith.constant 0 : i32
    %c0_i32_0 = arith.constant 0 : i32
    %c0_i32_1 = arith.constant 0 : i32
    return %arg0, %c0_i32, %c0_i32_0 : i32, i32, i32
  }
}

</mosaic_0001>

<llo_original>
// kernel: tpu_custom_call.1
$region0: #{tpu_custom_call.1}
  #allocation0 [shape = 'u32[]', space=smem, size = 0x4, offset = 0x4, fixed_abs, tag = 'smem constant byte address 0x4 - core index']
  #allocation1 [shape = 'u32[144,128]{1,0:T(1,128)}', space=vmem, size = 0x12000, scoped, tag = 'internal scratch']
  %s0 = inlined_call_operand.hbm [shape: f32[1,512], index: 0, kind: input, shape index: {}]
  %s1 = inlined_call_operand.hbm [shape: f32[1,512], index: 1, kind: input, shape index: {}]
  %s2 = inlined_call_operand.hbm [shape: f32[1,1,512], index: 2, kind: output, shape index: {}]
  %s3 = sld [smem:[#allocation0]]
  $region34: #{tpu_custom_call.1} parent=0
    _
  %s5 = ssub.s32 1, %s3
  %s6 = scalar_select 0, %s5, %s3
  $region1: #{tpu_custom_call.1} parent=0
    #allocation2 [shape = 'u8[2048]{0}', space=vmem, size = 0x800, scoped, tag = 'input window, operand 0, single buffered']
    #allocation3 [shape = 's32[1]{0}', space=sflag, size = 0x4, scoped, tag = 'scoped memory for tpu_custom_call.1']
    #allocation4 [shape = 's32[1]{0}', space=sflag, size = 0x4, scoped, tag = 'scoped memory for tpu_custom_call.1']
    #allocation5 [shape = 'u8[2048]{0}', space=vmem, size = 0x800, scoped, tag = 'input window, operand 1, single buffered']
    #allocation6 [shape = 's32[1]{0}', space=sflag, size = 0x4, scoped, tag = 'scoped memory for tpu_custom_call.1']
    #allocation7 [shape = 'u8[2048]{0}', space=vmem, size = 0x800, scoped, tag = 'output window, operand 0, single buffered']
    %7 = vsyncpa [#allocation3], 0
    %8 = vsyncpa [#allocation6], 0
    %9 = vsyncpa [#allocation4], 0
    // Predicated region
    $region2: #{tpu_custom_call.1} parent=1 // pred_check
      _
    $region3: #{tpu_custom_call.1} parent=1 // pred_check_branch
      %11 = sbr.rel (0) target = $region5
    $region4: #{tpu_custom_call.1} parent=1 // pred_region
      %s13 = ssub.s32 64, 64
      %14 = vsyncadd [#allocation3], %s13
      %s16 = sshll.u32 [#allocation2], 4
      %s17 = int_to_ptr.vmem [resolvable:$true] %s16
      %19 = dma.hbm_to_vmem [thread:$0]  %s0, 64, %s17, [#allocation3]
    $region5: #{tpu_custom_call.1} parent=1 // pred_fallthru
      _
    // Predicated region
    $region6: #{tpu_custom_call.1} parent=1 // pred_check
      _
    $region7: #{tpu_custom_call.1} parent=1 // pred_check_branch
      %21 = sbr.rel (0) target = $region9
    $region8: #{tpu_custom_call.1} parent=1 // pred_region
      %s23 = ssub.s32 64, 64
      %24 = vsyncadd [#allocation6], %s23
      %s26 = sshll.u32 [#allocation5], 4
      %s27 = int_to_ptr.vmem [resolvable:$true] %s26
      %29 = dma.hbm_to_vmem [thread:$0]  %s1, 64, %s27, [#allocation6]
    $region9: #{tpu_custom_call.1} parent=1 // pred_fallthru
      _
    // Predicated region
    $region10: #{tpu_custom_call.1} parent=1 // pred_check
      _
    $region11: #{tpu_custom_call.1} parent=1 // pred_check_branch
      %31 = sbr.rel (0) target = $region13
    $region12: #{tpu_custom_call.1} parent=1 // pred_region
      %32 = dma.done [#allocation3], 64
    $region13: #{tpu_custom_call.1} parent=1 // pred_fallthru
      _
    // Predicated region
    $region14: #{tpu_custom_call.1} parent=1 // pred_check
      _
    $region15: #{tpu_custom_call.1} parent=1 // pred_check_branch
      %34 = sbr.rel (0) target = $region17
    $region16: #{tpu_custom_call.1} parent=1 // pred_region
      %35 = dma.done [#allocation6], 64
    $region17: #{tpu_custom_call.1} parent=1 // pred_fallthru
      _
    %v36 = vld [vmem:[#allocation2] sm:$0xf]
    %v37 = vld [vmem:[#allocation5] sm:$0xf]
    %v38 = vmin.f32 %v36, %v37
    %v39 = vmax.f32 %v36, %v37
    %v41 = vlaneseq
    %v42 = vshrl.u32 %v41, 7
    %v43 = vsub.s32 0, %v42
    %v44 = vrot.slane %v38, %v43
    %v45 = vlaneseq
    %v46 = vshrl.u32 %v45, 7
    %v47 = vsub.s32 1, %v46
    %v48 = vrot.slane %v38, %v47
    %v49 = vlaneseq
    %v50 = vshrl.u32 %v49, 7
    %v51 = vsub.s32 2, %v50
    %v52 = vrot.slane %v38, %v51
    %v53 = vlaneseq
    %v54 = vshrl.u32 %v53, 7
    %v55 = vsub.s32 3, %v54
    %v56 = vrot.slane %v38, %v55
    %61 = vrot.lane.b32.xlu0 %v44, 126
    %v62 = vpop.permute.xlu0 %61
    %63 = vrot.lane.b32.xlu0 %v48, 126
    %v64 = vpop.permute.xlu0 %63
    %65 = vrot.lane.b32.xlu0 %v52, 126
    %v66 = vpop.permute.xlu0 %65
    %67 = vrot.lane.b32.xlu0 %v56, 126
    %v68 = vpop.permute.xlu0 %67
    %v69 = vlaneseq
    %v70 = vand.u32 %v69, 127
    %vm71 = vcmp.lt.s32.totalorder %v70, 126
    %v72 = vsel %vm71, %v66, %v68
    %v73 = vsel %vm71, %v64, %v66
    %v74 = vsel %vm71, %v62, %v64
    %v75 = vsel %vm71, %v68, %v62
    %v77 = vlaneseq
    %v78 = vshrl.u32 %v77, 7
    %v79 = vsub.s32 0, %v78
    %v80 = vrot.slane %v39, %v79
    %v81 = vlaneseq
    %v82 = vshrl.u32 %v81, 7
    %v83 = vsub.s32 1, %v82
    %v84 = vrot.slane %v39, %v83
    %v85 = vlaneseq
    %v86 = vshrl.u32 %v85, 7
    %v87 = vsub.s32 2, %v86
    %v88 = vrot.slane %v39, %v87
    %v89 = vlaneseq
    %v90 = vshrl.u32 %v89, 7
    %v91 = vsub.s32 3, %v90
    %v92 = vrot.slane %v39, %v91
    %v97 = vsub.f32 %v74, %v80
    %v98 = vsub.f32 %v73, %v84
    %v99 = vsub.f32 %v72, %v88
    %v100 = vsub.f32 %v75, %v92
    %v101 = vmax.f32 %v97, 0.0
    %v102 = vmax.f32 %v98, 0.0
    %v103 = vmax.f32 %v99, 0.0
    %v104 = vmax.f32 %v100, 0.0
    %105 = vrot.lane.b32.xlu0 %v80, 126
    %v106 = vpop.permute.xlu0 %105
    %107 = vrot.lane.b32.xlu0 %v84, 126
    %v108 = vpop.permute.xlu0 %107
    %109 = vrot.lane.b32.xlu0 %v88, 126
    %v110 = vpop.permute.xlu0 %109
    %111 = vrot.lane.b32.xlu0 %v92, 126
    %v112 = vpop.permute.xlu0 %111
    %v113 = vsel %vm71, %v110, %v112
    %v114 = vsel %vm71, %v108, %v110
    %v115 = vsel %vm71, %v106, %v108
    %v116 = vsel %vm71, %v112, %v106
    %v117 = vsub.f32 %v115, %v44
    %v118 = vsub.f32 %v114, %v48
    %v119 = vsub.f32 %v113, %v52
    %v120 = vsub.f32 %v116, %v56
    %v121 = vmax.f32 %v117, 0.0
    %v122 = vmax.f32 %v118, 0.0
    %v123 = vmax.f32 %v119, 0.0
    %v124 = vmax.f32 %v120, 0.0
    %v126 = vlaneseq
    %v127 = vshrl.u32 %v126, 7
    %v128 = vsub.s32 0, %v127
    %v129 = vrot.slane %v36, %v128
    %v130 = vlaneseq
    %v131 = vshrl.u32 %v130, 7
    %v132 = vsub.s32 1, %v131
    %v133 = vrot.slane %v36, %v132
    %v134 = vlaneseq
    %v135 = vshrl.u32 %v134, 7
    %v136 = vsub.s32 2, %v135
    %v137 = vrot.slane %v36, %v136
    %v138 = vlaneseq
    %v139 = vshrl.u32 %v138, 7
    %v140 = vsub.s32 3, %v139
    %v141 = vrot.slane %v36, %v140
    %146 = vrot.lane.b32.xlu0 %v129, 126
    %v147 = vpop.permute.xlu0 %146
    %148 = vrot.lane.b32.xlu0 %v133, 126
    %v149 = vpop.permute.xlu0 %148
    %150 = vrot.lane.b32.xlu0 %v137, 126
    %v151 = vpop.permute.xlu0 %150
    %152 = vrot.lane.b32.xlu0 %v141, 126
    %v153 = vpop.permute.xlu0 %152
    %v154 = vsel %vm71, %v151, %v153
    %v155 = vsel %vm71, %v149, %v151
    %v156 = vsel %vm71, %v147, %v149
    %v157 = vsel %vm71, %v153, %v147
    %v158 = vsub.f32 %v156, %v129
    %v159 = vsub.f32 %v155, %v133
    %v160 = vsub.f32 %v154, %v137
    %v161 = vsub.f32 %v157, %v141
    %v163 = vlaneseq
    %v164 = vshrl.u32 %v163, 7
    %v165 = vsub.s32 0, %v164
    %v166 = vrot.slane %v37, %v165
    %v167 = vlaneseq
    %v168 = vshrl.u32 %v167, 7
    %v169 = vsub.s32 1, %v168
    %v170 = vrot.slane %v37, %v169
    %v171 = vlaneseq
    %v172 = vshrl.u32 %v171, 7
    %v173 = vsub.s32 2, %v172
    %v174 = vrot.slane %v37, %v173
    %v175 = vlaneseq
    %v176 = vshrl.u32 %v175, 7
    %v177 = vsub.s32 3, %v176
    %v178 = vrot.slane %v37, %v177
    %183 = vrot.lane.b32.xlu0 %v166, 126
    %v184 = vpop.permute.xlu0 %183
    %185 = vrot.lane.b32.xlu0 %v170, 126
    %v186 = vpop.permute.xlu0 %185
    %187 = vrot.lane.b32.xlu0 %v174, 126
    %v188 = vpop.permute.xlu0 %187
    %189 = vrot.lane.b32.xlu0 %v178, 126
    %v190 = vpop.permute.xlu0 %189
    %v191 = vsel %vm71, %v188, %v190
    %v192 = vsel %vm71, %v186, %v188
    %v193 = vsel %vm71, %v184, %v186
    %v194 = vsel %vm71, %v190, %v184
    %v195 = vsub.f32 %v193, %v166
    %v196 = vsub.f32 %v192, %v170
    %v197 = vsub.f32 %v191, %v174
    %v198 = vsub.f32 %v194, %v178
    %199 = vrot.lane.b32.xlu0 %v101, 127
    %v200 = vpop.permute.xlu0 %199
    %201 = vrot.lane.b32.xlu0 %v102, 127
    %v202 = vpop.permute.xlu0 %201
    %203 = vrot.lane.b32.xlu0 %v103, 127
    %v204 = vpop.permute.xlu0 %203
    %205 = vrot.lane.b32.xlu0 %v104, 127
    %v206 = vpop.permute.xlu0 %205
    %vm207 = vcmp.lt.s32.totalorder %v70, 127
    %v208 = vsel %vm207, %v204, %v206
    %v209 = vsel %vm207, %v202, %v204
    %v210 = vsel %vm207, %v200, %v202
    %v211 = vsel %vm207, %v206, %v200
    %v212 = vmul.f32 %v101, %v210
    %v213 = vmul.f32 %v102, %v209
    %v214 = vmul.f32 %v103, %v208
    %v215 = vmul.f32 %v104, %v211
    %216 = vrot.lane.b32.xlu0 %v158, 127
    %v217 = vpop.permute.xlu0 %216
    %218 = vrot.lane.b32.xlu0 %v159, 127
    %v219 = vpop.permute.xlu0 %218
    %220 = vrot.lane.b32.xlu0 %v160, 127
    %v221 = vpop.permute.xlu0 %220
    %222 = vrot.lane.b32.xlu0 %v161, 127
    %v223 = vpop.permute.xlu0 %222
    %v224 = vsel %vm207, %v221, %v223
    %v225 = vsel %vm207, %v219, %v221
    %v226 = vsel %vm207, %v217, %v219
    %v227 = vsel %vm207, %v223, %v217
    %v228 = vmul.f32 %v158, %v226
    %v229 = vmul.f32 %v159, %v225
    %v230 = vmul.f32 %v160, %v224
    %v231 = vmul.f32 %v161, %v227
    %232 = vrot.lane.b32.xlu0 %v195, 127
    %v233 = vpop.permute.xlu0 %232
    %234 = vrot.lane.b32.xlu0 %v196, 127
    %v235 = vpop.permute.xlu0 %234
    %236 = vrot.lane.b32.xlu0 %v197, 127
    %v237 = vpop.permute.xlu0 %236
    %238 = vrot.lane.b32.xlu0 %v198, 127
    %v239 = vpop.permute.xlu0 %238
    %v240 = vsel %vm207, %v237, %v239
    %v241 = vsel %vm207, %v235, %v237
    %v242 = vsel %vm207, %v233, %v235
    %v243 = vsel %vm207, %v239, %v233
    %v244 = vmul.f32 %v195, %v242
    %v245 = vmul.f32 %v196, %v241
    %v246 = vmul.f32 %v197, %v240
    %v247 = vmul.f32 %v198, %v243
    %248 = vrot.lane.b32.xlu0 %v121, 127
    %v249 = vpop.permute.xlu0 %248
    %250 = vrot.lane.b32.xlu0 %v122, 127
    %v251 = vpop.permute.xlu0 %250
    %252 = vrot.lane.b32.xlu0 %v123, 127
    %v253 = vpop.permute.xlu0 %252
    %254 = vrot.lane.b32.xlu0 %v124, 127
    %v255 = vpop.permute.xlu0 %254
    %v256 = vsel %vm207, %v253, %v255
    %v257 = vsel %vm207, %v251, %v253
    %v258 = vsel %vm207, %v249, %v251
    %v259 = vsel %vm207, %v255, %v249
    %v260 = vmul.f32 %v121, %v258
    %v261 = vmul.f32 %v122, %v257
    %v262 = vmul.f32 %v123, %v256
    %v263 = vmul.f32 %v124, %v259
    %v264 = vadd.f32 %v260, 1e-06
    %v265 = vadd.f32 %v261, 1e-06
    %v266 = vadd.f32 %v262, 1e-06
    %v267 = vadd.f32 %v263, 1e-06
    %v268 = vadd.f32 %v228, %v244
    %v269 = vadd.f32 %v229, %v245
    %v270 = vadd.f32 %v230, %v246
    %v271 = vadd.f32 %v231, %v247
    %v272 = vsub.f32 %v268, %v212
    %v273 = vsub.f32 %v269, %v213
    %v274 = vsub.f32 %v270, %v214
    %v275 = vsub.f32 %v271, %v215
    %v276 = vadd.f32 %v272, 1e-06
    %v277 = vadd.f32 %v273, 1e-06
    %v278 = vadd.f32 %v274, 1e-06
    %v279 = vadd.f32 %v275, 1e-06
    %v280 = vrcp.pop %v276
    %v281 = vrcp.pop %v277
    %v282 = vrcp.pop %v278
    %v283 = vrcp.pop %v279
    %v284 = vmul.f32 %v212, %v280
    %v285 = vmul.f32 %v213, %v281
    %v286 = vmul.f32 %v214, %v282
    %v287 = vmul.f32 %v215, %v283
    %v288 = vsub.f32 2.0, %v284
    %v289 = vsub.f32 2.0, %v285
    %v290 = vsub.f32 2.0, %v286
    %v291 = vsub.f32 2.0, %v287
    %v292 = vrcp.pop %v264
    %v293 = vrcp.pop %v265
    %v294 = vrcp.pop %v266
    %v295 = vrcp.pop %v267
    %v296 = vmul.f32 %v276, %v292
    %v297 = vmul.f32 %v277, %v293
    %v298 = vmul.f32 %v278, %v294
    %v299 = vmul.f32 %v279, %v295
    %v300 = vsub.f32 %v288, %v296
    %v301 = vsub.f32 %v289, %v297
    %v302 = vsub.f32 %v290, %v298
    %v303 = vsub.f32 %v291, %v299
    %v304 = vadd.s32 %v70, 128
    %v305 = vadd.s32 %v70, 256
    %v306 = vadd.s32 %v70, 384
    %v307 = vand.u32 %v70, 3
    %v308 = vand.u32 %v304, 3
    %v309 = vand.u32 %v305, 3
    %v310 = vand.u32 %v306, 3
    %vm311 = vcmp.eq.s32.totalorder %v307, 0
    %vm312 = vcmp.eq.s32.totalorder %v308, 0
    %vm313 = vcmp.eq.s32.totalorder %v309, 0
    %vm314 = vcmp.eq.s32.totalorder %v310, 0
    %v315 = vsel %vm311, %v300, 0.0
    %v316 = vsel %vm312, %v301, 0.0
    %v317 = vsel %vm313, %v302, 0.0
    %v318 = vsel %vm314, %v303, 0.0
    %p319 = scmp.ne.s32.totalorder 0, 0
    // Predicated region
    $region18: #{tpu_custom_call.1} parent=1 // pred_check
      %p320 = pneg %p319
    $region19: #{tpu_custom_call.1} parent=1 // pred_check_branch
      %322 = sbr.rel (%p320) target = $region21
    $region20: #{tpu_custom_call.1} parent=1 // pred_region
      %v323 = vadd.f32 %v315, 0.0
      %v324 = vadd.f32 %v316, 0.0
      %v325 = vadd.f32 %v317, 0.0
      %v326 = vadd.f32 %v318, 0.0
      %v331 = vcombine.low %v323, %v324
      %v332 = vcombine.low %v325, %v326
      %v334 = vunpack.c.l.s4 1966171168
      %v335 = vunpack.c.0.s8 %v334
      %v336 = vlaneseq
      %v337 = vshrl.u32 %v336, 7
      %v338 = vsub.s32 %v335, %v337
      %v339 = vrot.slane %v331, %v338
      %v341 = vunpack.c.l.s4 1966171168
      %v342 = vunpack.c.0.s8 %v341
      %v343 = vlaneseq
      %v344 = vshrl.u32 %v343, 7
      %v345 = vsub.s32 %v342, %v344
      %v346 = vrot.slane %v332, %v345
      %v347 = vcombine.low %v339, %v346
      %v349 = vunpack.c.l.s4 1966171168
      %v350 = vunpack.c.0.s8 %v349
      %v351 = vlaneseq
      %v352 = vshrl.u32 %v351, 7
      %v353 = vsub.s32 %v350, %v352
      %v354 = vrot.slane %v347, %v353
      %v356 = vlaneseq
      %vm357 = vcmp.ge.s32.totalorder %v356, 0
      %vm358 = vcmp.lt.s32.totalorder %v356, 512
      %vm359 = vmand %vm357, %vm358
      %360 = vst.msk [vmem:[#allocation7] sm:$0xf] %vm359, %v354
    $region21: #{tpu_custom_call.1} parent=1 // pred_fallthru
      _
    %p361 = scmp.eq.s32.totalorder 0, 0
    // Predicated region
    $region22: #{tpu_custom_call.1} parent=1 // pred_check
      %p362 = pneg %p361
    $region23: #{tpu_custom_call.1} parent=1 // pred_check_branch
      %364 = sbr.rel (%p362) target = $region25
    $region24: #{tpu_custom_call.1} parent=1 // pred_region
      %v365 = vlaneseq
      %v366 = vshrl.u32 %v365, 7
      %v367 = vstv 0
      %v368 = vadd.s32 %v367, %v366
      %v369 = vmul.u32 %v368, 128
      %v370 = vshra.s32 %v70, 2
      %v371 = vshra.s32 %v304, 2
      %v372 = vshra.s32 %v305, 2
      %v373 = vshra.s32 %v306, 2
      %v374 = vadd.s32 %v369, %v370
      %v375 = vadd.s32 %v369, %v371
      %v376 = vadd.s32 %v369, %v372
      %v377 = vadd.s32 %v369, %v373
      %vm378 = vcmp.lt.s32.totalorder %v374, 10
      %vm379 = vcmp.lt.s32.totalorder %v375, 10
      %vm380 = vcmp.lt.s32.totalorder %v376, 10
      %vm381 = vcmp.lt.s32.totalorder %v377, 10
      %v382 = vsel %vm378, %v315, 0.0
      %v383 = vsel %vm379, %v316, 0.0
      %v384 = vsel %vm380, %v317, 0.0
      %v385 = vsel %vm381, %v318, 0.0
      %v386 = vadd.f32 %v382, 0.0
      %v387 = vadd.f32 %v383, 0.0
      %v388 = vadd.f32 %v384, 0.0
      %v389 = vadd.f32 %v385, 0.0
      %v394 = vcombine.low %v386, %v387
      %v395 = vcombine.low %v388, %v389
      %v397 = vunpack.c.l.s4 1966171168
      %v398 = vunpack.c.0.s8 %v397
      %v399 = vlaneseq
      %v400 = vshrl.u32 %v399, 7
      %v401 = vsub.s32 %v398, %v400
      %v402 = vrot.slane %v394, %v401
      %v404 = vunpack.c.l.s4 1966171168
      %v405 = vunpack.c.0.s8 %v404
      %v406 = vlaneseq
      %v407 = vshrl.u32 %v406, 7
      %v408 = vsub.s32 %v405, %v407
      %v409 = vrot.slane %v395, %v408
      %v410 = vcombine.low %v402, %v409
      %v412 = vunpack.c.l.s4 1966171168
      %v413 = vunpack.c.0.s8 %v412
      %v414 = vlaneseq
      %v415 = vshrl.u32 %v414, 7
      %v416 = vsub.s32 %v413, %v415
      %v417 = vrot.slane %v410, %v416
      %v419 = vlaneseq
      %vm420 = vcmp.ge.s32.totalorder %v419, 0
      %vm421 = vcmp.lt.s32.totalorder %v419, 512
      %vm422 = vmand %vm420, %vm421
      %423 = vst.msk [vmem:[#allocation7] sm:$0xf] %vm422, %v417
    $region25: #{tpu_custom_call.1} parent=1 // pred_fallthru
      _
    // Predicated region
    $region26: #{tpu_custom_call.1} parent=1 // pred_check
      _
    $region27: #{tpu_custom_call.1} parent=1 // pred_check_branch
      %425 = sbr.rel (0) target = $region29
    $region28: #{tpu_custom_call.1} parent=1 // pred_region
      %s427 = ssub.s32 64, 64
      %428 = vsyncadd [#allocation4], %s427
      %s430 = sshll.u32 [#allocation7], 4
      %s431 = int_to_ptr.vmem [resolvable:$true] %s430
      %433 = dma.vmem_to_hbm [thread:$0]  %s431, 64, %s2, [#allocation4]
    $region29: #{tpu_custom_call.1} parent=1 // pred_fallthru
      _
    // Predicated region
    $region30: #{tpu_custom_call.1} parent=1 // pred_check
      _
    $region31: #{tpu_custom_call.1} parent=1 // pred_check_branch
      %435 = sbr.rel (0) target = $region33
    $region32: #{tpu_custom_call.1} parent=1 // pred_region
      %436 = dma.done [#allocation4], 64
    $region33: #{tpu_custom_call.1} parent=1 // pred_fallthru
      _
    %437 = vsyncpa [#allocation3], 1
    %438 = vsyncpa [#allocation6], 1
    %439 = vsyncpa [#allocation4], 1

</llo_original>
